<compile_context>
chip_gen: v6e
topology: v6e:2x2x1
jax: 0.10.0
libtpu: 0.0.40
codegen_flags: <defaults>
</compile_context>

<pallas_src>
import jax
import jax.numpy as jnp
from jax.experimental import pallas as pl
from jax.experimental.pallas import tpu as pltpu


def _round_up(x, m):
    return ((x + m - 1) // m) * m


def _vmem_capacity_bytes():
    try:
        return int(pltpu.get_tpu_info().vmem_capacity_bytes)
    except Exception:
        return 64 * 1024 * 1024  # conservative fallback (v7x per-TC VMEM)


def _num_tensorcores():
    # Only v7x-class chips have 2 TensorCores per chip; on v5e/v6e a core split
    # is just a serial loop with extra overhead, so use 1 there.
    try:
        kind = jax.devices()[0].device_kind.lower()
    except Exception:
        return 1
    return 2 if "v7" in kind else 1


def _make_kernel(*, mel_scale, gate_scale, n_rows, tile_rows, total_tiles,
                 steps_per_core, need_tail_mask, need_tile_guard):
    """All arguments are static Python values baked into the kernel."""

    def kernel(gate_out_ref, gate_tgt_ref, mo_ref, mp_ref, mt_ref,
               out_ref, acc_ref, gacc_ref):
        c = pl.program_id(0)            # core-split axis ("parallel")
        i = pl.program_id(1)            # row-tile reduction axis ("arbitrary")

        @pl.when(i == 0)
        def _init():
            acc_ref[...] = jnp.zeros_like(acc_ref)
            gacc_ref[...] = jnp.zeros_like(gacc_ref)

        # Gate BCE: gate blocks are resident (constant index_map); compute once.
        @pl.when((i == 0) & (c == 0))
        def _gate():
            x = gate_out_ref[...].astype(jnp.float32)
            y = gate_tgt_ref[...].astype(jnp.float32)
            # numerically stable BCE-with-logits: max(x,0) - x*y + log1p(exp(-|x|))
            bce = jnp.maximum(x, 0.0) - x * y + jnp.log1p(jnp.exp(-jnp.abs(x)))
            gacc_ref[...] = jnp.sum(bce, axis=(0, 1), keepdims=True) * gate_scale

        def mel_partial():
            mo = mo_ref[...].astype(jnp.float32)
            mp = mp_ref[...].astype(jnp.float32)
            mt = mt_ref[...].astype(jnp.float32)
            d1 = mo - mt
            d2 = mp - mt
            if need_tail_mask:
                # Rows past R hold garbage (partial last tile) -> mask the
                # diffs BEFORE squaring so Inf/NaN never enters the sum.
                tile_id = c * steps_per_core + i
                rows_rem = n_rows - tile_id * tile_rows
                row_ids = jax.lax.broadcasted_iota(jnp.int32, d1.shape, 0)
                valid = row_ids < rows_rem
                d1 = jnp.where(valid, d1, 0.0)
                d2 = jnp.where(valid, d2, 0.0)
            sq = d1 * d1 + d2 * d2
            # Fold (tile_rows, T) -> (tile_rows//8, 8, T) and sum the slabs:
            # pure VPU elementwise adds; the cross-lane reduce is deferred to
            # the finalize step.
            acc_ref[...] += jnp.sum(
                sq.reshape(tile_rows // 8, 8, sq.shape[-1]), axis=0)

        if need_tile_guard:
            # Uneven core split: duplicated tail tiles are DMA'd (index clamped
            # in the index_map) but must not be accumulated twice.
            @pl.when(c * steps_per_core + i < total_tiles)
            def _():
                mel_partial()
        else:
            mel_partial()

        @pl.when(i == pl.num_programs(1) - 1)
        def _finalize():
            mel_sum = jnp.sum(acc_ref[...], axis=(0, 1), keepdims=True)
            out_ref[...] = mel_sum * mel_scale + gacc_ref[...]

    return kernel


def tacotron2_loss(model_output, targets, *, cores=None):
    """model_output = (mel_out, mel_out_postnet, gate_out, _alignments)
       targets      = (mel_target, gate_target)"""
    mel_out, mel_out_postnet, gate_out, _ = model_output
    mel_target, gate_target = targets[0], targets[1]

    B, n_mel, T = mel_out.shape
    n_mel_elems = B * n_mel * T
    n_gate_elems = int(gate_out.size)

    # ---- mel: reshape only (collapsing contiguous dims is free); NO padding.
    R = B * n_mel
    mo2 = mel_out.reshape(R, T)
    mp2 = mel_out_postnet.reshape(R, T)
    mt2 = mel_target.reshape(R, T)

    itemsize = jnp.dtype(mel_out.dtype).itemsize

    # ---- tile sizing derived from this chip's VMEM capacity.
    vmem_cap = _vmem_capacity_bytes()
    vmem_limit = max(16 * 1024 * 1024,
                     min(vmem_cap * 2 // 3, 96 * 1024 * 1024))
    budget = vmem_limit // 2                      # 3 mel inputs x 2 buffers
    per_row = 3 * 2 * T * itemsize
    tile_rows = max(8, (budget // per_row) // 8 * 8)
    tile_rows = min(tile_rows, _round_up(R, 8))   # multiple of 8 by construction

    total_tiles = pl.cdiv(R, tile_rows)
    if cores is None:
        cores = _num_tensorcores()
    cores = max(1, min(int(cores), total_tiles))
    steps_per_core = pl.cdiv(total_tiles, cores)

    need_tail_mask = (R % tile_rows) != 0
    need_tile_guard = (cores * steps_per_core) != total_tiles

    # ---- gate (~80x smaller): pad to a lane-dense 2D block; pad logits use
    #      -30000 with target 0 so padded BCE terms are exactly 0.
    G = n_gate_elems
    G_pad = _round_up(G, 8 * 128)
    go = jnp.pad(gate_out.reshape(-1), (0, G_pad - G), constant_values=-30000.0)
    gt = jnp.pad(gate_target.reshape(-1), (0, G_pad - G))
    go2 = go.reshape(G_pad // 128, 128)
    gt2 = gt.reshape(G_pad // 128, 128)

    def mel_index_map(c, i):
        # Clamp so no block is ever fully out of bounds; duplicated tail tiles
        # are skipped inside the kernel with pl.when.
        return (jnp.minimum(c * steps_per_core + i, total_tiles - 1), 0)

    mel_block = pl.BlockSpec((tile_rows, T), mel_index_map)
    gate_block_out = pl.BlockSpec(go2.shape, lambda c, i: (0, 0))
    gate_block_tgt = pl.BlockSpec(gt2.shape, lambda c, i: (0, 0))

    grid_spec = pltpu.PrefetchScalarGridSpec(
        num_scalar_prefetch=0,
        grid=(cores, steps_per_core),
        in_specs=[gate_block_out, gate_block_tgt, mel_block, mel_block, mel_block],
        out_specs=pl.BlockSpec((None, 1, 1), lambda c, i: (c, 0, 0)),
        scratch_shapes=[pltpu.VMEM((8, T), jnp.float32),   # vreg-shaped mel acc
                        pltpu.VMEM((1, 1), jnp.float32)],  # gate BCE partial
    )

    cost = pl.CostEstimate(
        flops=7 * n_mel_elems + 5 * n_gate_elems,
        transcendentals=2 * n_gate_elems,
        bytes_accessed=int(mo2.nbytes + mp2.nbytes + mt2.nbytes
                           + go2.nbytes + gt2.nbytes + 4 * cores),
    )

    kernel = _make_kernel(
        mel_scale=1.0 / n_mel_elems, gate_scale=1.0 / n_gate_elems,
        n_rows=R, tile_rows=tile_rows, total_tiles=total_tiles,
        steps_per_core=steps_per_core, need_tail_mask=need_tail_mask,
        need_tile_guard=need_tile_guard)

    partials = pl.pallas_call(
        kernel,
        out_shape=jax.ShapeDtypeStruct((cores, 1, 1), jnp.float32),
        grid_spec=grid_spec,
        compiler_params=pltpu.CompilerParams(
            dimension_semantics=("parallel", "arbitrary"),
            vmem_limit_bytes=int(vmem_limit),
        ),
        cost_estimate=cost,
    )(go2, gt2, mo2, mp2, mt2)

    return jnp.sum(partials)


def _reference_loss(model_output, targets):
    mel_out, mel_out_postnet, gate_out, _ = model_output
    mel_target, gate_target = targets
    mse1 = jnp.mean((mel_out - mel_target) ** 2)
    mse2 = jnp.mean((mel_out_postnet - mel_target) ** 2)
    x = gate_out.reshape(-1, 1)
    y = gate_target.reshape(-1, 1)
    bce = jnp.mean(jnp.maximum(x, 0.0) - x * y + jnp.log1p(jnp.exp(-jnp.abs(x))))
    return mse1 + mse2 + bce


if __name__ == "__main__":
    key = jax.random.PRNGKey(0)
    B, N_MEL, T = 2, 8, 16
    k1, k2, k3, k4, k5 = jax.random.split(key, 5)

    mel_out = jax.random.normal(k1, (B, N_MEL, T), jnp.float32)
    mel_out_postnet = jax.random.normal(k2, (B, N_MEL, T), jnp.float32)
    gate_out = jax.random.normal(k3, (B, T), jnp.float32)
    alignments = jnp.zeros((B, T, T), jnp.float32)  # unused by the loss (as in PyTorch)

    mel_target = jax.random.normal(k4, (B, N_MEL, T), jnp.float32)
    gate_target = (jax.random.uniform(k5, (B, T)) > 0.5).astype(jnp.float32)

    model_output = (mel_out, mel_out_postnet, gate_out, alignments)
    targets = (mel_target, gate_target)

    loss = tacotron2_loss(model_output, targets)
    jax.block_until_ready(loss)

    ref = _reference_loss(model_output, targets)
    assert jnp.allclose(loss, ref, rtol=1e-5, atol=1e-5), (loss, ref)
    print("KERNEL_OK")
</pallas_src>

<mosaic_0001>
module attributes {stable_mosaic.version = 11 : i64} {
  func.func @kernel(%arg0: i32, %arg1: i32, %arg2: memref<8x128xf32, #tpu.memory_space<vmem>>, %arg3: memref<8x128xf32, #tpu.memory_space<vmem>>, %arg4: memref<16x16xf32, #tpu.memory_space<vmem>>, %arg5: memref<16x16xf32, #tpu.memory_space<vmem>>, %arg6: memref<16x16xf32, #tpu.memory_space<vmem>>, %arg7: memref<1x1x1xf32, #tpu.memory_space<vmem>>, %arg8: memref<8x16xf32, #tpu.memory_space<vmem>>, %arg9: memref<1x1xf32, #tpu.memory_space<vmem>>) attributes {dimension_semantics = [#tpu.dimension_semantics<parallel>, #tpu.dimension_semantics<arbitrary>], iteration_bounds = array<i64: 1, 1>, scalar_prefetch = 0 : i64, scratch_operands = 2 : i64, tpu.core_type = #tpu.core_type<tc>, window_params = [{pipeline_mode = #tpu.pipeline_mode<synchronous>, transform_indices = @transform_0, window_bounds = array<i64: 8, 128>}, {pipeline_mode = #tpu.pipeline_mode<synchronous>, transform_indices = @transform_1, window_bounds = array<i64: 8, 128>}, {transform_indices = @transform_2, window_bounds = array<i64: 16, 16>}, {transform_indices = @transform_3, window_bounds = array<i64: 16, 16>}, {transform_indices = @transform_4, window_bounds = array<i64: 16, 16>}, {transform_indices = @transform_5, window_bounds = array<i64: 1, 1, 1>}]} {
    %c0_i32 = arith.constant 0 : i32
    %0 = arith.cmpi eq, %arg1, %c0_i32 : i32
    %1 = arith.extui %0 : i1 to i32
    %c0_i32_0 = arith.constant 0 : i32
    %2 = arith.cmpi ne, %1, %c0_i32_0 : i32
    scf.if %2 {
      %cst_15 = arith.constant 0.000000e+00 : f32
      %24 = vector.broadcast %cst_15 : f32 to vector<8x16xf32>
      %c0_16 = arith.constant 0 : index
      %c0_17 = arith.constant 0 : index
      %25 = vector.load %arg8[%c0_16, %c0_17] : memref<8x16xf32, #tpu.memory_space<vmem>>, vector<8x16xf32>
      tpu.vector_store %arg8[%c0_16, %c0_17], %24 {strides = array<i32>} : memref<8x16xf32, #tpu.memory_space<vmem>>, vector<8x16xf32>,
      %cst_18 = arith.constant 0.000000e+00 : f32
      %26 = vector.broadcast %cst_18 : f32 to vector<1x1xf32>
      %c0_19 = arith.constant 0 : index
      %c0_20 = arith.constant 0 : index
      %27 = vector.load %arg9[%c0_19, %c0_20] : memref<1x1xf32, #tpu.memory_space<vmem>>, vector<1x1xf32>
      tpu.vector_store %arg9[%c0_19, %c0_20], %26 {strides = array<i32>} : memref<1x1xf32, #tpu.memory_space<vmem>>, vector<1x1xf32>,
    } else {
    }
    %c0_i32_1 = arith.constant 0 : i32
    %3 = arith.cmpi eq, %arg1, %c0_i32_1 : i32
    %c0_i32_2 = arith.constant 0 : i32
    %4 = arith.cmpi eq, %arg0, %c0_i32_2 : i32
    %5 = arith.andi %3, %4 : i1
    %6 = arith.extui %5 : i1 to i32
    %c0_i32_3 = arith.constant 0 : i32
    %7 = arith.cmpi ne, %6, %c0_i32_3 : i32
    scf.if %7 {
      %c0_15 = arith.constant 0 : index
      %c0_16 = arith.constant 0 : index
      %24 = vector.load %arg2[%c0_15, %c0_16] : memref<8x128xf32, #tpu.memory_space<vmem>>, vector<8x128xf32>
      %c0_17 = arith.constant 0 : index
      %c0_18 = arith.constant 0 : index
      %25 = vector.load %arg3[%c0_17, %c0_18] : memref<8x128xf32, #tpu.memory_space<vmem>>, vector<8x128xf32>
      %cst_19 = arith.constant 0.000000e+00 : f32
      %26 = vector.broadcast %cst_19 : f32 to vector<8x128xf32>
      %27 = arith.maximumf %24, %26 : vector<8x128xf32>
      %28 = arith.mulf %24, %25 : vector<8x128xf32>
      %29 = arith.subf %27, %28 : vector<8x128xf32>
      %30 = math.absf %24 : vector<8x128xf32>
      %cst_20 = arith.constant 0.000000e+00 : f32
      %31 = vector.broadcast %cst_20 : f32 to vector<8x128xf32>
      %32 = arith.subf %31, %30 : vector<8x128xf32>
      %33 = math.exp %32 : vector<8x128xf32>
      %34 = math.log1p %33 : vector<8x128xf32>
      %35 = arith.addf %29, %34 : vector<8x128xf32>
      %36 = vector.shape_cast %35 : vector<8x128xf32> to vector<1x8x128xf32>
      %cst_21 = arith.constant dense<0.000000e+00> : vector<1xf32>
      %37 = vector.multi_reduction <add>, %36, %cst_21 [1, 2] : vector<1x8x128xf32> to vector<1xf32>
      %38 = vector.shape_cast %37 : vector<1xf32> to vector<1x1x1xf32>
      %39 = vector.extract %38[0, 0, 0] : f32 from vector<1x1x1xf32>
      %40 = vector.broadcast %39 : f32 to vector<1x1xf32>
      %cst_22 = arith.constant 3.125000e-02 : f32
      %41 = vector.broadcast %cst_22 : f32 to vector<1x1xf32>
      %42 = arith.mulf %40, %41 : vector<1x1xf32>
      %c0_23 = arith.constant 0 : index
      %c0_24 = arith.constant 0 : index
      %43 = vector.load %arg9[%c0_23, %c0_24] : memref<1x1xf32, #tpu.memory_space<vmem>>, vector<1x1xf32>
      tpu.vector_store %arg9[%c0_23, %c0_24], %42 {strides = array<i32>} : memref<1x1xf32, #tpu.memory_space<vmem>>, vector<1x1xf32>,
    } else {
    }
    %c0 = arith.constant 0 : index
    %c0_4 = arith.constant 0 : index
    %8 = vector.load %arg4[%c0, %c0_4] : memref<16x16xf32, #tpu.memory_space<vmem>>, vector<16x16xf32>
    %c0_5 = arith.constant 0 : index
    %c0_6 = arith.constant 0 : index
    %9 = vector.load %arg5[%c0_5, %c0_6] : memref<16x16xf32, #tpu.memory_space<vmem>>, vector<16x16xf32>
    %c0_7 = arith.constant 0 : index
    %c0_8 = arith.constant 0 : index
    %10 = vector.load %arg6[%c0_7, %c0_8] : memref<16x16xf32, #tpu.memory_space<vmem>>, vector<16x16xf32>
    %11 = arith.subf %8, %10 : vector<16x16xf32>
    %12 = arith.subf %9, %10 : vector<16x16xf32>
    %13 = arith.mulf %11, %11 : vector<16x16xf32>
    %14 = arith.mulf %12, %12 : vector<16x16xf32>
    %15 = arith.addf %13, %14 : vector<16x16xf32>
    %c0_9 = arith.constant 0 : index
    %c0_10 = arith.constant 0 : index
    %16 = vector.load %arg8[%c0_9, %c0_10] : memref<8x16xf32, #tpu.memory_space<vmem>>, vector<8x16xf32>
    %17 = vector.shape_cast %15 : vector<16x16xf32> to vector<2x8x16xf32>
    %cst = arith.constant dense<0.000000e+00> : vector<8x16xf32>
    %18 = vector.multi_reduction <add>, %17, %cst [0] : vector<2x8x16xf32> to vector<8x16xf32>
    %19 = arith.addf %16, %18 : vector<8x16xf32>
    %c0_11 = arith.constant 0 : index
    %c0_12 = arith.constant 0 : index
    %20 = vector.load %arg8[%c0_11, %c0_12] : memref<8x16xf32, #tpu.memory_space<vmem>>, vector<8x16xf32>
    tpu.vector_store %arg8[%c0_11, %c0_12], %19 {strides = array<i32>} : memref<8x16xf32, #tpu.memory_space<vmem>>, vector<8x16xf32>,
    %c0_i32_13 = arith.constant 0 : i32
    %21 = arith.cmpi eq, %arg1, %c0_i32_13 : i32
    %22 = arith.extui %21 : i1 to i32
    %c0_i32_14 = arith.constant 0 : i32
    %23 = arith.cmpi ne, %22, %c0_i32_14 : i32
    scf.if %23 {
      %c0_15 = arith.constant 0 : index
      %c0_16 = arith.constant 0 : index
      %24 = vector.load %arg8[%c0_15, %c0_16] : memref<8x16xf32, #tpu.memory_space<vmem>>, vector<8x16xf32>
      %25 = vector.shape_cast %24 : vector<8x16xf32> to vector<1x8x16xf32>
      %cst_17 = arith.constant dense<0.000000e+00> : vector<1xf32>
      %26 = vector.multi_reduction <add>, %25, %cst_17 [1, 2] : vector<1x8x16xf32> to vector<1xf32>
      %27 = vector.shape_cast %26 : vector<1xf32> to vector<1x1x1xf32>
      %28 = vector.extract %27[0, 0, 0] : f32 from vector<1x1x1xf32>
      %29 = vector.broadcast %28 : f32 to vector<1x1xf32>
      %cst_18 = arith.constant 3.906250e-03 : f32
      %30 = vector.broadcast %cst_18 : f32 to vector<1x1xf32>
      %31 = arith.mulf %29, %30 : vector<1x1xf32>
      %c0_19 = arith.constant 0 : index
      %c0_20 = arith.constant 0 : index
      %32 = vector.load %arg9[%c0_19, %c0_20] : memref<1x1xf32, #tpu.memory_space<vmem>>, vector<1x1xf32>
      %33 = arith.addf %31, %32 : vector<1x1xf32>
      %c0_21 = arith.constant 0 : index
      %c0_22 = arith.constant 0 : index
      %c0_23 = arith.constant 0 : index
      %34 = vector.load %arg7[%c0_21, %c0_22, %c0_23] : memref<1x1x1xf32, #tpu.memory_space<vmem>>, vector<1x1x1xf32>
      %35 = vector.shape_cast %34 : vector<1x1x1xf32> to vector<1x1xf32>
      %36 = vector.shape_cast %33 : vector<1x1xf32> to vector<1x1x1xf32>
      tpu.vector_store %arg7[%c0_21, %c0_22, %c0_23], %36 {strides = array<i32>} : memref<1x1x1xf32, #tpu.memory_space<vmem>>, vector<1x1x1xf32>,
    } else {
    }
    return
  }
  func.func @transform_0(%arg0: i32, %arg1: i32) -> (i32, i32) {
    %c0_i32 = arith.constant 0 : i32
    %c0_i32_0 = arith.constant 0 : i32
    %c0_i32_1 = arith.constant 0 : i32
    return %c0_i32, %c0_i32_0 : i32, i32
  }
  func.func @transform_1(%arg0: i32, %arg1: i32) -> (i32, i32) {
    %c0_i32 = arith.constant 0 : i32
    %c0_i32_0 = arith.constant 0 : i32
    %c0_i32_1 = arith.constant 0 : i32
    return %c0_i32, %c0_i32_0 : i32, i32
  }
  func.func @transform_2(%arg0: i32, %arg1: i32) -> (i32, i32) {
    %c1_i32 = arith.constant 1 : i32
    %0 = arith.muli %arg0, %c1_i32 : i32
    %1 = arith.addi %0, %arg1 : i32
    %c0_i32 = arith.constant 0 : i32
    %2 = arith.minsi %1, %c0_i32 : i32
    %c0_i32_0 = arith.constant 0 : i32
    %c0_i32_1 = arith.constant 0 : i32
    return %2, %c0_i32_0 : i32, i32
  }
  func.func @transform_3(%arg0: i32, %arg1: i32) -> (i32, i32) {
    %c1_i32 = arith.constant 1 : i32
    %0 = arith.muli %arg0, %c1_i32 : i32
    %1 = arith.addi %0, %arg1 : i32
    %c0_i32 = arith.constant 0 : i32
    %2 = arith.minsi %1, %c0_i32 : i32
    %c0_i32_0 = arith.constant 0 : i32
    %c0_i32_1 = arith.constant 0 : i32
    return %2, %c0_i32_0 : i32, i32
  }
  func.func @transform_4(%arg0: i32, %arg1: i32) -> (i32, i32) {
    %c1_i32 = arith.constant 1 : i32
    %0 = arith.muli %arg0, %c1_i32 : i32
    %1 = arith.addi %0, %arg1 : i32
    %c0_i32 = arith.constant 0 : i32
    %2 = arith.minsi %1, %c0_i32 : i32
    %c0_i32_0 = arith.constant 0 : i32
    %c0_i32_1 = arith.constant 0 : i32
    return %2, %c0_i32_0 : i32, i32
  }
  func.func @transform_5(%arg0: i32, %arg1: i32) -> (i32, i32, i32) {
    %c0_i32 = arith.constant 0 : i32
    %c0_i32_0 = arith.constant 0 : i32
    %c0_i32_1 = arith.constant 0 : i32
    return %arg0, %c0_i32, %c0_i32_0 : i32, i32, i32
  }
}

</mosaic_0001>

<llo_original>
// kernel: tpu_custom_call.1
$region0: #{tpu_custom_call.1}
  #allocation0 [shape = 'u32[]', space=smem, size = 0x4, offset = 0x4, fixed_abs, tag = 'smem constant byte address 0x4 - core index']
  #allocation1 [shape = 'u32[144,128]{1,0:T(1,128)}', space=vmem, size = 0x12000, scoped, tag = 'internal scratch']
  #allocation2 [shape = 'f32[8,16]{1,0:T(8,128)}', space=vmem, size = 0x1000, scoped, tag = 'scratch operand']
  #allocation3 [shape = 'f32[1,1]{1,0:T(1,128)}', space=vmem, size = 0x200, scoped, tag = 'scratch operand']
  %s0 = inlined_call_operand.hbm [shape: f32[8,128], index: 0, kind: input, shape index: {}]
  %s1 = inlined_call_operand.hbm [shape: f32[8,128], index: 1, kind: input, shape index: {}]
  %s2 = inlined_call_operand.hbm [shape: f32[16,16], index: 2, kind: input, shape index: {}]
  %s3 = inlined_call_operand.hbm [shape: f32[16,16], index: 3, kind: input, shape index: {}]
  %s4 = inlined_call_operand.hbm [shape: f32[16,16], index: 4, kind: input, shape index: {}]
  %s5 = inlined_call_operand.hbm [shape: f32[1,1,1], index: 5, kind: output, shape index: {}]
  %s6 = sld [smem:[#allocation0]]
  $region62: #{tpu_custom_call.1} parent=0
    _
  %s8 = ssub.s32 1, %s6
  %s9 = scalar_select 0, %s8, %s6
  $region1: #{tpu_custom_call.1} parent=0
    #allocation4 [shape = 'u8[4096]{0}', space=vmem, size = 0x1000, scoped, tag = 'input window, operand 0, single buffered']
    #allocation5 [shape = 's32[1]{0}', space=sflag, size = 0x4, scoped, tag = 'scoped memory for tpu_custom_call.1']
    #allocation6 [shape = 's32[1]{0}', space=sflag, size = 0x4, scoped, tag = 'scoped memory for tpu_custom_call.1']
    #allocation7 [shape = 'u8[4096]{0}', space=vmem, size = 0x1000, scoped, tag = 'input window, operand 1, single buffered']
    #allocation8 [shape = 's32[1]{0}', space=sflag, size = 0x4, scoped, tag = 'scoped memory for tpu_custom_call.1']
    #allocation9 [shape = 'u8[8192]{0}', space=vmem, size = 0x2000, scoped, tag = 'input window, operand 2, single buffered']
    #allocation10 [shape = 'u8[8192]{0}', space=vmem, size = 0x2000, scoped, tag = 'input window, operand 3, single buffered']
    #allocation11 [shape = 's32[1]{0}', space=sflag, size = 0x4, scoped, tag = 'scoped memory for tpu_custom_call.1']
    #allocation12 [shape = 'u8[8192]{0}', space=vmem, size = 0x2000, scoped, tag = 'input window, operand 4, single buffered']
    #allocation13 [shape = 'u8[512]{0}', space=vmem, size = 0x400, scoped, tag = 'output window, operand 0, single buffered']
    %10 = vsyncpa [#allocation5], 0
    %11 = vsyncpa [#allocation8], 0
    %12 = vsyncpa [#allocation11], 0
    %13 = vsyncpa [#allocation6], 0
    // Predicated region
    $region2: #{tpu_custom_call.1} parent=1 // pred_check
      _
    $region3: #{tpu_custom_call.1} parent=1 // pred_check_branch
      %15 = sbr.rel (0) target = $region5
    $region4: #{tpu_custom_call.1} parent=1 // pred_region
      %s17 = ssub.s32 128, 128
      %18 = vsyncadd [#allocation5], %s17
      %s20 = sshll.u32 [#allocation4], 4
      %s21 = int_to_ptr.vmem [resolvable:$true] %s20
      %23 = dma.hbm_to_vmem [thread:$0]  %s0, 128, %s21, [#allocation5]
    $region5: #{tpu_custom_call.1} parent=1 // pred_fallthru
      _
    // Predicated region
    $region6: #{tpu_custom_call.1} parent=1 // pred_check
      _
    $region7: #{tpu_custom_call.1} parent=1 // pred_check_branch
      %25 = sbr.rel (0) target = $region9
    $region8: #{tpu_custom_call.1} parent=1 // pred_region
      %s27 = ssub.s32 128, 128
      %28 = vsyncadd [#allocation8], %s27
      %s30 = sshll.u32 [#allocation7], 4
      %s31 = int_to_ptr.vmem [resolvable:$true] %s30
      %33 = dma.hbm_to_vmem [thread:$0]  %s1, 128, %s31, [#allocation8]
    $region9: #{tpu_custom_call.1} parent=1 // pred_fallthru
      _
    // Predicated region
    $region10: #{tpu_custom_call.1} parent=1 // pred_check
      _
    $region11: #{tpu_custom_call.1} parent=1 // pred_check_branch
      %35 = sbr.rel (0) target = $region13
    $region12: #{tpu_custom_call.1} parent=1 // pred_region
      %s36 = sadd.s32 0, 0
      %p37 = scmp.lt.s32.totalorder %s36, 0
      %s38 = scalar_select %p37, %s36, 0
      %s39 = smul.u32 2, %s38
      %s41 = ssub.s32 256, 256
      %42 = vsyncadd [#allocation8], %s41
      %s43 = smul.addr %s39, 128
      %s44 = scalar_lea.hbm %s2, %s43
      %s45 = sshll.u32 [#allocation9], 4
      %s46 = int_to_ptr.vmem [resolvable:$true] %s45
      %51 = dma.hbm_to_vmem [thread:$0]  %s44, 256, %s46, [#allocation8], 128, 128, 8
    $region13: #{tpu_custom_call.1} parent=1 // pred_fallthru
      _
    // Predicated region
    $region14: #{tpu_custom_call.1} parent=1 // pred_check
      _
    $region15: #{tpu_custom_call.1} parent=1 // pred_check_branch
      %53 = sbr.rel (0) target = $region17
    $region16: #{tpu_custom_call.1} parent=1 // pred_region
      %s54 = sadd.s32 0, 0
      %p55 = scmp.lt.s32.totalorder %s54, 0
      %s56 = scalar_select %p55, %s54, 0
      %s57 = smul.u32 2, %s56
      %s59 = ssub.s32 256, 256
      %60 = vsyncadd [#allocation11], %s59
      %s61 = smul.addr %s57, 128
      %s62 = scalar_lea.hbm %s3, %s61
      %s63 = sshll.u32 [#allocation10], 4
      %s64 = int_to_ptr.vmem [resolvable:$true] %s63
      %69 = dma.hbm_to_vmem [thread:$0]  %s62, 256, %s64, [#allocation11], 128, 128, 8
    $region17: #{tpu_custom_call.1} parent=1 // pred_fallthru
      _
    // Predicated region
    $region18: #{tpu_custom_call.1} parent=1 // pred_check
      _
    $region19: #{tpu_custom_call.1} parent=1 // pred_check_branch
      %71 = sbr.rel (0) target = $region21
    $region20: #{tpu_custom_call.1} parent=1 // pred_region
      %s72 = sadd.s32 0, 0
      %p73 = scmp.lt.s32.totalorder %s72, 0
      %s74 = scalar_select %p73, %s72, 0
      %s75 = smul.u32 2, %s74
      %s77 = ssub.s32 256, 256
      %78 = vsyncadd [#allocation11], %s77
      %s79 = smul.addr %s75, 128
      %s80 = scalar_lea.hbm %s4, %s79
      %s81 = sshll.u32 [#allocation12], 4
      %s82 = int_to_ptr.vmem [resolvable:$true] %s81
      %87 = dma.hbm_to_vmem [thread:$0]  %s80, 256, %s82, [#allocation11], 128, 128, 8
    $region21: #{tpu_custom_call.1} parent=1 // pred_fallthru
      _
    // Predicated region
    $region22: #{tpu_custom_call.1} parent=1 // pred_check
      _
    $region23: #{tpu_custom_call.1} parent=1 // pred_check_branch
      %89 = sbr.rel (0) target = $region25
    $region24: #{tpu_custom_call.1} parent=1 // pred_region
      %90 = dma.done [#allocation5], 128
    $region25: #{tpu_custom_call.1} parent=1 // pred_fallthru
      _
    // Predicated region
    $region26: #{tpu_custom_call.1} parent=1 // pred_check
      _
    $region27: #{tpu_custom_call.1} parent=1 // pred_check_branch
      %92 = sbr.rel (0) target = $region29
    $region28: #{tpu_custom_call.1} parent=1 // pred_region
      %93 = dma.done [#allocation8], 128
    $region29: #{tpu_custom_call.1} parent=1 // pred_fallthru
      _
    // Predicated region
    $region30: #{tpu_custom_call.1} parent=1 // pred_check
      _
    $region31: #{tpu_custom_call.1} parent=1 // pred_check_branch
      %95 = sbr.rel (0) target = $region33
    $region32: #{tpu_custom_call.1} parent=1 // pred_region
      %96 = dma.done [#allocation8], 256
    $region33: #{tpu_custom_call.1} parent=1 // pred_fallthru
      _
    // Predicated region
    $region34: #{tpu_custom_call.1} parent=1 // pred_check
      _
    $region35: #{tpu_custom_call.1} parent=1 // pred_check_branch
      %98 = sbr.rel (0) target = $region37
    $region36: #{tpu_custom_call.1} parent=1 // pred_region
      %99 = dma.done [#allocation11], 256
    $region37: #{tpu_custom_call.1} parent=1 // pred_fallthru
      _
    // Predicated region
    $region38: #{tpu_custom_call.1} parent=1 // pred_check
      _
    $region39: #{tpu_custom_call.1} parent=1 // pred_check_branch
      %101 = sbr.rel (0) target = $region41
    $region40: #{tpu_custom_call.1} parent=1 // pred_region
      %102 = dma.done [#allocation11], 256
    $region41: #{tpu_custom_call.1} parent=1 // pred_fallthru
      _
    %s103 = sadd.s32 0, 0
    %p104 = scmp.lt.s32.totalorder %s103, 0
    %s105 = scalar_select %p104, %s103, 0
    %s106 = smul.u32 2, %s105
    %s107 = sadd.s32 0, 0
    %p108 = scmp.lt.s32.totalorder %s107, 0
    %s109 = scalar_select %p108, %s107, 0
    %s110 = smul.u32 2, %s109
    %s111 = sadd.s32 0, 0
    %p112 = scmp.lt.s32.totalorder %s111, 0
    %s113 = scalar_select %p112, %s111, 0
    %s114 = smul.u32 2, %s113
    %p115 = scmp.eq.s32.totalorder 0, 0
    // Predicated region
    $region42: #{tpu_custom_call.1} parent=1 // pred_check
      %p116 = pneg %p115
    $region43: #{tpu_custom_call.1} parent=1 // pred_check_branch
      %118 = sbr.rel (%p116) target = $region45
    $region44: #{tpu_custom_call.1} parent=1 // pred_region
      %vm119 = vcmask 130048
      %120 = vst.msk [vmem:[#allocation2] sm:$0xff] %vm119, 0.0
      %vm121 = vcmask 0
      %122 = vst.msk [vmem:[#allocation3] sm:$0x1] %vm121, 0.0
    $region45: #{tpu_custom_call.1} parent=1 // pred_fallthru
      _
    %p123 = scmp.eq.s32.totalorder 0, 0
    %p124 = pnand %p115, %p123
    %p125 = pneg %p124
    // Predicated region
    $region46: #{tpu_custom_call.1} parent=1 // pred_check
      _
    $region47: #{tpu_custom_call.1} parent=1 // pred_check_branch
      %127 = sbr.rel (%p124) target = $region49
    $region48: #{tpu_custom_call.1} parent=1 // pred_region
      %v128 = vld [vmem:[#allocation4] sm:$0xff]
      %v129 = vld [vmem:[#allocation7] sm:$0xff]
      %v130 = vmax.f32 %v128, 0.0
      %v131 = vmul.f32 %v128, %v129
      %v132 = vsub.f32 %v130, %v131
      %v133 = vand.u32 2147483647, %v128
      %v134 = vsub.f32 0.0, %v133
      %v135 = vmul.f32 %v134, 1.442695
      %v136 = vpow.pop %v135
      %v137 = vadd.f32 %v136, 1.0
      %v138 = vlog2.pop %v137
      %v139 = vmul.f32 %v138, 0.6931472
      %v140 = vmul.f32 -0.5, %v136
      %v141 = vadd.f32 %v140, 1.0
      %v142 = vmul.f32 %v141, %v136
      %v143 = vand.u32 2147483647, %v136
      %vm144 = vcmp.lt.f32.partialorder %v143, 0.0004427343
      %v145 = vsel %vm144, %v142, %v139
      %v146 = vadd.f32 %v132, %v145
      %147 = vadd.xlane.f32.xlu0 %v146
      %v148 = vpop.xlane.xlu0 %147
      %v149 = vrot.slane %v148, 4
      %v150 = vadd.f32 %v148, %v149
      %v151 = vrot.slane %v150, 2
      %v152 = vadd.f32 %v150, %v151
      %v153 = vrot.slane %v152, 1
      %v154 = vadd.f32 %v152, %v153
      %s155 = vtos %v154
      %v156 = vstv %s155
      %v157 = vmul.f32 %v156, 0.03125
      %vm158 = vcmask 0
      %159 = vst.msk [vmem:[#allocation3] sm:$0x1] %vm158, %v157
    $region49: #{tpu_custom_call.1} parent=1 // pred_fallthru
      _
    %v160 = vld [vmem:[#allocation9] sm:$0xff]
    %v161 = vld [vmem:[#allocation9 + $0x8] sm:$0xff]
    %v162 = vld [vmem:[#allocation10] sm:$0xff]
    %v163 = vld [vmem:[#allocation10 + $0x8] sm:$0xff]
    %v164 = vld [vmem:[#allocation12] sm:$0xff]
    %v165 = vld [vmem:[#allocation12 + $0x8] sm:$0xff]
    %v166 = vsub.f32 %v160, %v164
    %v167 = vsub.f32 %v161, %v165
    %v168 = vsub.f32 %v162, %v164
    %v169 = vsub.f32 %v163, %v165
    %v170 = vmul.f32 %v166, %v166
    %v171 = vmul.f32 %v167, %v167
    %v172 = vmul.f32 %v168, %v168
    %v173 = vmul.f32 %v169, %v169
    %v174 = vadd.f32 %v170, %v172
    %v175 = vadd.f32 %v171, %v173
    %v176 = vld [vmem:[#allocation2] sm:$0xff]
    %vm177 = vcmask 130048
    %v178 = vsel %vm177, %v174, 0.0
    %v179 = vsel %vm177, %v175, 0.0
    %v180 = vadd.f32 %v178, %v179
    %v181 = vadd.f32 %v176, %v180
    %182 = vst.msk [vmem:[#allocation2] sm:$0xff] %vm177, %v181
    // Predicated region
    $region50: #{tpu_custom_call.1} parent=1 // pred_check
      %p183 = pneg %p115
    $region51: #{tpu_custom_call.1} parent=1 // pred_check_branch
      %185 = sbr.rel (%p183) target = $region53
    $region52: #{tpu_custom_call.1} parent=1 // pred_region
      %v186 = vld [vmem:[#allocation2] sm:$0xff]
      %v187 = vsel %vm177, %v186, 0.0
      %188 = vadd.xlane.f32.xlu0 %v187
      %v189 = vpop.xlane.xlu0 %188
      %v190 = vrot.slane %v189, 4
      %v191 = vadd.f32 %v189, %v190
      %v192 = vrot.slane %v191, 2
      %v193 = vadd.f32 %v191, %v192
      %v194 = vrot.slane %v193, 1
      %v195 = vadd.f32 %v193, %v194
      %s196 = vtos %v195
      %v197 = vstv %s196
      %v198 = vmul.f32 %v197, 0.00390625
      %v199 = vld [vmem:[#allocation3] sm:$0x1]
      %v200 = vadd.f32 %v198, %v199
      %vm201 = vcmask 0
      %202 = vst.msk [vmem:[#allocation13] sm:$0x1] %vm201, %v200
    $region53: #{tpu_custom_call.1} parent=1 // pred_fallthru
      _
    // Predicated region
    $region54: #{tpu_custom_call.1} parent=1 // pred_check
      _
    $region55: #{tpu_custom_call.1} parent=1 // pred_check_branch
      %204 = sbr.rel (0) target = $region57
    $region56: #{tpu_custom_call.1} parent=1 // pred_region
      %s206 = ssub.s32 16, 16
      %207 = vsyncadd [#allocation6], %s206
      %s209 = sshll.u32 [#allocation13], 4
      %s210 = int_to_ptr.vmem [resolvable:$true] %s209
      %212 = dma.vmem_to_hbm [thread:$0]  %s210, 16, %s5, [#allocation6]
    $region57: #{tpu_custom_call.1} parent=1 // pred_fallthru
      _
    // Predicated region
    $region58: #{tpu_custom_call.1} parent=1 // pred_check
      _
    $region59: #{tpu_custom_call.1} parent=1 // pred_check_branch
      %214 = sbr.rel (0) target = $region61
    $region60: #{tpu_custom_call.1} parent=1 // pred_region
      %215 = dma.done [#allocation6], 16
    $region61: #{tpu_custom_call.1} parent=1 // pred_fallthru
      _
    %216 = vsyncpa [#allocation5], 1
    %217 = vsyncpa [#allocation8], 1
    %218 = vsyncpa [#allocation11], 1
    %219 = vsyncpa [#allocation6], 1

</llo_original>
